<compile_context>
chip_gen: v5e
topology: v5e:2x2
jax: 0.10.0
libtpu: 0.0.40
codegen_flags: <defaults>
</compile_context>

<pallas_src>
import jax
import jax.numpy as jnp
from jax.experimental import pallas as pl
from jax.experimental.pallas import tpu as pltpu

HIGHEST = jax.lax.Precision.HIGHEST  # only used by the pure-JAX reference


# ----------------------------- Pallas kernel ------------------------------ #

def make_cnnet_kernel(B, T, L3):
    """Kernel body for B row-segments of length T (K samples packed in lanes).

    Flat-row layout: segment b occupies rows [b*T, (b+1)*T).  After the two
    (virtual) pools, valid positions sit at rows b*T + 4*p, p in [0, L3).
    """

    def conv(h, w_ref, b_ref, dil):
        # Valid conv along rows with dilated taps; taps statically unrolled,
        # one MXU dot per tap, summed in f32.  Weights are bf16 (block-diag
        # over the K lane groups); the activation operand is cast to bf16 so
        # both MXU operands are bf16 with f32 accumulation.
        ks = w_ref.shape[0]
        rout = h.shape[0] - (ks - 1) * dil
        acc = jnp.dot(h[0:rout, :].astype(jnp.bfloat16), w_ref[0],
                      preferred_element_type=jnp.float32)
        for t in range(1, ks):
            acc = acc + jnp.dot(
                h[t * dil:t * dil + rout, :].astype(jnp.bfloat16), w_ref[t],
                preferred_element_type=jnp.float32)
        return acc + b_ref[...]

    def relu_bn(h, s_ref, o_ref):
        return jnp.maximum(h, 0.0) * s_ref[...] + o_ref[...]

    def pool2(h, dil):
        # MaxPool1d(kernel=2, stride=2) over valid positions sitting `dil`
        # rows apart: pure VPU max of two row-shifted slices (no subsampling;
        # the following conv uses dilation 2*dil instead).
        rout = h.shape[0] - dil
        return jnp.maximum(h[0:rout, :], h[dil:dil + rout, :])

    def kernel(x_ref,
               w1_ref, b1_ref, s1_ref, o1_ref,
               w2_ref, b2_ref, s2_ref, o2_ref,
               w3_ref, b3_ref,
               w4_ref, b4_ref,
               out_ref):
        x = x_ref[...]                     # (B*T, K*S) flat rows, lane-packed

        # block 1: conv -> relu -> BN(folded) -> dropout(id) -> pool(2)
        h = conv(x, w1_ref, b1_ref, 1)     # valid @ rows b*T + p     (stride 1)
        h = relu_bn(h, s1_ref, o1_ref)
        h = pool2(h, 1)                    # valid @ rows b*T + 2*q   (stride 2)

        # block 2
        h = conv(h, w2_ref, b2_ref, 2)     # dilation 2 follows the stride-2 grid
        h = relu_bn(h, s2_ref, o2_ref)
        h = pool2(h, 2)                    # valid @ rows b*T + 4*u   (stride 4)

        # block 3: conv -> relu (BN3 affine folded into w4/b4 in the wrapper)
        h = conv(h, w3_ref, b3_ref, 4)     # dilation 4 follows the stride-4 grid
        h = jnp.maximum(h, 0.0)

        # final 1x1 conv == per-row matmul (block-diag over lane groups)
        h = jnp.dot(h.astype(jnp.bfloat16), w4_ref[...],
                    preferred_element_type=jnp.float32) + b4_ref[...]

        # Per-segment max over the L3 valid (stride-4) positions:
        # tree of row-shifted element-wise maxima, then pick row b*T of the
        # result (g[b*T] = max_p h[b*T + 4p]; garbage rows are never read).
        R = h.shape[0] - 4 * (L3 - 1)
        g = h[0:R, :]
        for p in range(1, L3):
            g = jnp.maximum(g, h[4 * p:4 * p + R, :])

        # single lane-dense store of all B*K*O outputs
        out_ref[...] = jnp.concatenate(
            [g[b * T:b * T + 1, :] for b in range(B)], axis=1)

    return kernel


# ------------------------------ JAX wrapper -------------------------------- #

def pack_params(params, K):
    """Pack per-channel params into lane-packed kernel params (done once).

    * block-diagonal bf16 weights over the K lane groups
    * biases / BN scale-offset tiled to K*C lanes, kept f32
    * block-3 BN affine folded into the final 1x1 conv (post-ReLU -> exact)
    """
    ks, S, H = params['w1'].shape
    O = params['w4'].shape[1]

    def bdiag(w):                          # (ks, Cin, Cout) -> (ks, K*Cin, K*Cout)
        t, cin, cout = w.shape
        eye = jnp.eye(K, dtype=w.dtype)
        bd = jnp.einsum('kl,tio->tkilo', eye, w)
        return bd.reshape(t, K * cin, K * cout)

    def tile_row(v):                       # (1, C) -> (1, K*C)
        return jnp.tile(v, (1, K)).astype(jnp.float32)

    # fold block-3 BN (y = relu*s3 + o3) into the 1x1 conv: exact, post-ReLU
    w4f = params['w4'] * params['s3'].reshape(H, 1)        # (H, O)
    b4f = params['b4'] + params['o3'] @ params['w4']       # (1, O)

    return {
        'w1': bdiag(params['w1']).astype(jnp.bfloat16),
        'w2': bdiag(params['w2']).astype(jnp.bfloat16),
        'w3': bdiag(params['w3']).astype(jnp.bfloat16),
        'w4': bdiag(w4f[None])[0].astype(jnp.bfloat16),    # (K*H, K*O)
        'b1': tile_row(params['b1']),
        's1': tile_row(params['s1']),
        'o1': tile_row(params['o1']),
        'b2': tile_row(params['b2']),
        's2': tile_row(params['s2']),
        'o2': tile_row(params['o2']),
        'b3': tile_row(params['b3']),
        'b4': tile_row(b4f),
    }


def cnnet_forward(inputs, packed):
    """inputs: (B, T, K, S) float32 -> (B*K, out_channel) float32."""
    B, T, K, S = inputs.shape
    ks = packed['w1'].shape[0]
    KS, KH = packed['w1'].shape[1], packed['w1'].shape[2]
    KO = packed['w4'].shape[1]
    assert KS == K * S, (KS, K, S)
    O = KO // K

    # sequence lengths through the network (floor-mode pooling)
    L1 = T - ks + 1
    Lh1 = L1 // 2
    L2 = Lh1 - ks + 1
    Lh2 = L2 // 2
    L3 = Lh2 - ks + 1
    assert L3 >= 1, "sequence too short for this kernel_size"

    rows_in = B * T
    rows_out = rows_in - (7 * (ks - 1) + 3)          # rows surviving all layers
    assert (B - 1) * T + 4 * (L3 - 1) < rows_out     # last segment fits

    # FREE contiguous reshape (no transpose, no HBM copy): rows are (b, t),
    # lanes are (k, s).  The K samples ride the lane axis with block-diagonal
    # weights, so the PyTorch transpose(1, 2) never has to materialize.
    x = inputs.reshape(rows_in, K * S)
    if x.dtype != jnp.float32:
        x = x.astype(jnp.float32)

    kernel = make_cnnet_kernel(B, T, L3)

    def fixed(shape):
        nd = len(shape)
        return pl.BlockSpec(shape, lambda g, _nd=nd: (0,) * _nd)

    in_specs = [
        fixed((rows_in, K * S)),
        fixed((ks, KS, KH)), fixed((1, KH)), fixed((1, KH)), fixed((1, KH)),
        fixed((ks, KH, KH)), fixed((1, KH)), fixed((1, KH)), fixed((1, KH)),
        fixed((ks, KH, KH)), fixed((1, KH)),
        fixed((KH, KO)), fixed((1, KO)),
    ]

    out = pl.pallas_call(
        kernel,
        out_shape=jax.ShapeDtypeStruct((1, B * KO), jnp.float32),
        grid_spec=pltpu.PrefetchScalarGridSpec(
            num_scalar_prefetch=0,
            # Single step: kernel is launch/DMA bound on v5e/v6e/v7x, so a
            # 2-way "parallel" split only adds per-step pipeline overhead
            # (and a second writeback DMA) for no measured benefit.
            grid=(1,),
            in_specs=in_specs,
            out_specs=fixed((1, B * KO)),
        ),
        compiler_params=pltpu.CompilerParams(
            dimension_semantics=("arbitrary",)),
    )(x,
      packed['w1'], packed['b1'], packed['s1'], packed['o1'],
      packed['w2'], packed['b2'], packed['s2'], packed['o2'],
      packed['w3'], packed['b3'],
      packed['w4'], packed['b4'])

    # (1, B*K*O) -> (B*K, O): contiguous reshape, row n = b*K + k matches the
    # PyTorch transpose(1,2).reshape(B*K, ...) sample ordering.
    return out.reshape(B * K, O)


# --------------------------- deterministic params --------------------------- #

def init_params(key, kernel_size, in_channel, hidden_channel, out_channel):
    ks = kernel_size
    eps = 1e-5
    keys = jax.random.split(key, 16)

    def conv_w(k, c_out, c_in, klen):
        # PyTorch Conv1d weight (C_out, C_in, ks) -> layout (ks, C_in, C_out)
        w = 0.1 * jax.random.normal(k, (c_out, c_in, klen), jnp.float32)
        return jnp.transpose(w, (2, 1, 0))

    def bn_fold(k, c):
        k1, k2, k3, k4 = jax.random.split(k, 4)
        gamma = 1.0 + 0.1 * jax.random.normal(k1, (c,), jnp.float32)
        beta = 0.1 * jax.random.normal(k2, (c,), jnp.float32)
        mean = 0.1 * jax.random.normal(k3, (c,), jnp.float32)
        var = 1.0 + 0.1 * jax.random.uniform(k4, (c,), jnp.float32)
        scale = gamma / jnp.sqrt(var + eps)
        offset = beta - mean * scale
        return scale.reshape(1, c), offset.reshape(1, c)

    p = {}
    p['w1'] = conv_w(keys[0], hidden_channel, in_channel, ks)
    p['b1'] = (0.1 * jax.random.normal(keys[1], (hidden_channel,),
                                       jnp.float32)).reshape(1, -1)
    p['s1'], p['o1'] = bn_fold(keys[2], hidden_channel)
    p['w2'] = conv_w(keys[3], hidden_channel, hidden_channel, ks)
    p['b2'] = (0.1 * jax.random.normal(keys[4], (hidden_channel,),
                                       jnp.float32)).reshape(1, -1)
    p['s2'], p['o2'] = bn_fold(keys[5], hidden_channel)
    p['w3'] = conv_w(keys[6], hidden_channel, hidden_channel, ks)
    p['b3'] = (0.1 * jax.random.normal(keys[7], (hidden_channel,),
                                       jnp.float32)).reshape(1, -1)
    p['s3'], p['o3'] = bn_fold(keys[8], hidden_channel)
    w4 = 0.1 * jax.random.normal(keys[9], (out_channel, hidden_channel, 1),
                                 jnp.float32)
    p['w4'] = jnp.transpose(w4[:, :, 0])  # (hidden, out)
    p['b4'] = (0.1 * jax.random.normal(keys[10], (out_channel,),
                                       jnp.float32)).reshape(1, -1)
    return p


# ----------------------------- pure-JAX reference --------------------------- #

def cnnet_reference(inputs, p):
    B, T, K, S = inputs.shape
    x = jnp.transpose(inputs, (0, 2, 1, 3)).reshape(B * K, T, S)
    x = x.astype(jnp.float32)

    def conv(h, w, b):
        ks = w.shape[0]
        L = h.shape[1] - ks + 1
        acc = jnp.zeros((h.shape[0], L, w.shape[2]), jnp.float32)
        for t in range(ks):
            acc = acc + jnp.einsum('nlc,cd->nld', h[:, t:t + L], w[t],
                                   precision=HIGHEST)
        return acc + b

    def pool(h):
        Lh = h.shape[1] // 2
        return jnp.maximum(h[:, 0:2 * Lh:2], h[:, 1:2 * Lh:2])

    h = conv(x, p['w1'], p['b1'])
    h = jnp.maximum(h, 0.0) * p['s1'] + p['o1']
    h = pool(h)
    h = conv(h, p['w2'], p['b2'])
    h = jnp.maximum(h, 0.0) * p['s2'] + p['o2']
    h = pool(h)
    h = conv(h, p['w3'], p['b3'])
    h = jnp.maximum(h, 0.0) * p['s3'] + p['o3']
    h = jnp.einsum('nlc,cd->nld', h, p['w4'], precision=HIGHEST) + p['b4']
    return jnp.max(h, axis=1)


# ----------------------------------- main ----------------------------------- #

if __name__ == "__main__":
    # Small shapes consistent with the module:
    #   inputs (B, T, K, S); Conv1d in_channel = S, length = T.
    B, T, K, S = 2, 32, 4, 8
    kernel_size, hidden_channel, out_channel = 3, 16, 8

    key = jax.random.PRNGKey(0)
    k_in, k_p = jax.random.split(key)
    inputs = jax.random.normal(k_in, (B, T, K, S), jnp.float32)
    params = init_params(k_p, kernel_size, S, hidden_channel, out_channel)
    packed = pack_params(params, K)          # one-time weight packing

    y = cnnet_forward(inputs, packed)
    y = jax.block_until_ready(y)

    y_ref = cnnet_reference(inputs, params)
    assert y.shape == (B * K, out_channel), y.shape
    max_err = float(jnp.max(jnp.abs(y - y_ref)))
    assert jnp.allclose(y, y_ref, rtol=1e-2, atol=1e-2), max_err

    print("KERNEL_OK")
</pallas_src>

<mosaic_0001>
module attributes {stable_mosaic.version = 11 : i64} {
  func.func @kernel(%arg0: i32, %arg1: memref<64x32xf32, #tpu.memory_space<vmem>>, %arg2: memref<3x32x64xbf16, #tpu.memory_space<vmem>>, %arg3: memref<1x64xf32, #tpu.memory_space<vmem>>, %arg4: memref<1x64xf32, #tpu.memory_space<vmem>>, %arg5: memref<1x64xf32, #tpu.memory_space<vmem>>, %arg6: memref<3x64x64xbf16, #tpu.memory_space<vmem>>, %arg7: memref<1x64xf32, #tpu.memory_space<vmem>>, %arg8: memref<1x64xf32, #tpu.memory_space<vmem>>, %arg9: memref<1x64xf32, #tpu.memory_space<vmem>>, %arg10: memref<3x64x64xbf16, #tpu.memory_space<vmem>>, %arg11: memref<1x64xf32, #tpu.memory_space<vmem>>, %arg12: memref<64x32xbf16, #tpu.memory_space<vmem>>, %arg13: memref<1x32xf32, #tpu.memory_space<vmem>>, %arg14: memref<1x64xf32, #tpu.memory_space<vmem>>) attributes {dimension_semantics = [#tpu.dimension_semantics<arbitrary>], iteration_bounds = array<i64: 1>, scalar_prefetch = 0 : i64, scratch_operands = 0 : i64, tpu.core_type = #tpu.core_type<tc>, window_params = [{pipeline_mode = #tpu.pipeline_mode<synchronous>, transform_indices = @transform_0, window_bounds = array<i64: 64, 32>}, {pipeline_mode = #tpu.pipeline_mode<synchronous>, transform_indices = @transform_1, window_bounds = array<i64: 3, 32, 64>}, {pipeline_mode = #tpu.pipeline_mode<synchronous>, transform_indices = @transform_2, window_bounds = array<i64: 1, 64>}, {pipeline_mode = #tpu.pipeline_mode<synchronous>, transform_indices = @transform_3, window_bounds = array<i64: 1, 64>}, {pipeline_mode = #tpu.pipeline_mode<synchronous>, transform_indices = @transform_4, window_bounds = array<i64: 1, 64>}, {pipeline_mode = #tpu.pipeline_mode<synchronous>, transform_indices = @transform_5, window_bounds = array<i64: 3, 64, 64>}, {pipeline_mode = #tpu.pipeline_mode<synchronous>, transform_indices = @transform_6, window_bounds = array<i64: 1, 64>}, {pipeline_mode = #tpu.pipeline_mode<synchronous>, transform_indices = @transform_7, window_bounds = array<i64: 1, 64>}, {pipeline_mode = #tpu.pipeline_mode<synchronous>, transform_indices = @transform_8, window_bounds = array<i64: 1, 64>}, {pipeline_mode = #tpu.pipeline_mode<synchronous>, transform_indices = @transform_9, window_bounds = array<i64: 3, 64, 64>}, {pipeline_mode = #tpu.pipeline_mode<synchronous>, transform_indices = @transform_10, window_bounds = array<i64: 1, 64>}, {pipeline_mode = #tpu.pipeline_mode<synchronous>, transform_indices = @transform_11, window_bounds = array<i64: 64, 32>}, {pipeline_mode = #tpu.pipeline_mode<synchronous>, transform_indices = @transform_12, window_bounds = array<i64: 1, 32>}, {pipeline_mode = #tpu.pipeline_mode<synchronous>, transform_indices = @transform_13, window_bounds = array<i64: 1, 64>}]} {
    %c0 = arith.constant 0 : index
    %c0_0 = arith.constant 0 : index
    %0 = vector.load %arg1[%c0, %c0_0] : memref<64x32xf32, #tpu.memory_space<vmem>>, vector<64x32xf32>
    %1 = vector.extract_strided_slice %0 {offsets = [0, 0], sizes = [62, 32], strides = [1, 1]} : vector<64x32xf32> to vector<62x32xf32>
    %2 = arith.truncf %1 : vector<62x32xf32> to vector<62x32xbf16>
    %c0_1 = arith.constant 0 : index
    %c0_2 = arith.constant 0 : index
    %c0_3 = arith.constant 0 : index
    %3 = vector.load %arg2[%c0_1, %c0_2, %c0_3] : memref<3x32x64xbf16, #tpu.memory_space<vmem>>, vector<1x32x64xbf16>
    %4 = vector.shape_cast %3 : vector<1x32x64xbf16> to vector<32x64xbf16>
    %cst = arith.constant dense<0.000000e+00> : vector<62x64xf32>
    %5 = tpu.matmul %2, %4, %cst {dimension_numbers = #tpu.dot_dimension_numbers<[1], [0], [0], [1], [0, 0, 1, 1], [], []>} : vector<62x32xbf16>, vector<32x64xbf16>, vector<62x64xf32> -> vector<62x64xf32>
    %6 = vector.extract_strided_slice %0 {offsets = [1, 0], sizes = [62, 32], strides = [1, 1]} : vector<64x32xf32> to vector<62x32xf32>
    %7 = arith.truncf %6 : vector<62x32xf32> to vector<62x32xbf16>
    %c1 = arith.constant 1 : index
    %c0_4 = arith.constant 0 : index
    %c0_5 = arith.constant 0 : index
    %8 = vector.load %arg2[%c1, %c0_4, %c0_5] : memref<3x32x64xbf16, #tpu.memory_space<vmem>>, vector<1x32x64xbf16>
    %9 = vector.shape_cast %8 : vector<1x32x64xbf16> to vector<32x64xbf16>
    %cst_6 = arith.constant dense<0.000000e+00> : vector<62x64xf32>
    %10 = tpu.matmul %7, %9, %cst_6 {dimension_numbers = #tpu.dot_dimension_numbers<[1], [0], [0], [1], [0, 0, 1, 1], [], []>} : vector<62x32xbf16>, vector<32x64xbf16>, vector<62x64xf32> -> vector<62x64xf32>
    %11 = arith.addf %5, %10 : vector<62x64xf32>
    %12 = vector.extract_strided_slice %0 {offsets = [2, 0], sizes = [62, 32], strides = [1, 1]} : vector<64x32xf32> to vector<62x32xf32>
    %13 = arith.truncf %12 : vector<62x32xf32> to vector<62x32xbf16>
    %c2 = arith.constant 2 : index
    %c0_7 = arith.constant 0 : index
    %c0_8 = arith.constant 0 : index
    %14 = vector.load %arg2[%c2, %c0_7, %c0_8] : memref<3x32x64xbf16, #tpu.memory_space<vmem>>, vector<1x32x64xbf16>
    %15 = vector.shape_cast %14 : vector<1x32x64xbf16> to vector<32x64xbf16>
    %cst_9 = arith.constant dense<0.000000e+00> : vector<62x64xf32>
    %16 = tpu.matmul %13, %15, %cst_9 {dimension_numbers = #tpu.dot_dimension_numbers<[1], [0], [0], [1], [0, 0, 1, 1], [], []>} : vector<62x32xbf16>, vector<32x64xbf16>, vector<62x64xf32> -> vector<62x64xf32>
    %17 = arith.addf %11, %16 : vector<62x64xf32>
    %c0_10 = arith.constant 0 : index
    %c0_11 = arith.constant 0 : index
    %18 = vector.load %arg3[%c0_10, %c0_11] : memref<1x64xf32, #tpu.memory_space<vmem>>, vector<1x64xf32>
    %19 = vector.broadcast %18 : vector<1x64xf32> to vector<62x64xf32>
    %20 = arith.addf %17, %19 : vector<62x64xf32>
    %cst_12 = arith.constant 0.000000e+00 : f32
    %21 = vector.broadcast %cst_12 : f32 to vector<62x64xf32>
    %22 = arith.maximumf %20, %21 : vector<62x64xf32>
    %c0_13 = arith.constant 0 : index
    %c0_14 = arith.constant 0 : index
    %23 = vector.load %arg4[%c0_13, %c0_14] : memref<1x64xf32, #tpu.memory_space<vmem>>, vector<1x64xf32>
    %24 = vector.broadcast %23 : vector<1x64xf32> to vector<62x64xf32>
    %25 = arith.mulf %22, %24 : vector<62x64xf32>
    %c0_15 = arith.constant 0 : index
    %c0_16 = arith.constant 0 : index
    %26 = vector.load %arg5[%c0_15, %c0_16] : memref<1x64xf32, #tpu.memory_space<vmem>>, vector<1x64xf32>
    %27 = vector.broadcast %26 : vector<1x64xf32> to vector<62x64xf32>
    %28 = arith.addf %25, %27 : vector<62x64xf32>
    %29 = vector.extract_strided_slice %28 {offsets = [0, 0], sizes = [61, 64], strides = [1, 1]} : vector<62x64xf32> to vector<61x64xf32>
    %30 = vector.extract_strided_slice %28 {offsets = [1, 0], sizes = [61, 64], strides = [1, 1]} : vector<62x64xf32> to vector<61x64xf32>
    %31 = arith.maximumf %29, %30 : vector<61x64xf32>
    %32 = vector.extract_strided_slice %31 {offsets = [0, 0], sizes = [57, 64], strides = [1, 1]} : vector<61x64xf32> to vector<57x64xf32>
    %33 = arith.truncf %32 : vector<57x64xf32> to vector<57x64xbf16>
    %c0_17 = arith.constant 0 : index
    %c0_18 = arith.constant 0 : index
    %c0_19 = arith.constant 0 : index
    %34 = vector.load %arg6[%c0_17, %c0_18, %c0_19] : memref<3x64x64xbf16, #tpu.memory_space<vmem>>, vector<1x64x64xbf16>
    %35 = vector.shape_cast %34 : vector<1x64x64xbf16> to vector<64x64xbf16>
    %cst_20 = arith.constant dense<0.000000e+00> : vector<57x64xf32>
    %36 = tpu.matmul %33, %35, %cst_20 {dimension_numbers = #tpu.dot_dimension_numbers<[1], [0], [0], [1], [0, 0, 1, 1], [], []>} : vector<57x64xbf16>, vector<64x64xbf16>, vector<57x64xf32> -> vector<57x64xf32>
    %37 = vector.extract_strided_slice %31 {offsets = [2, 0], sizes = [57, 64], strides = [1, 1]} : vector<61x64xf32> to vector<57x64xf32>
    %38 = arith.truncf %37 : vector<57x64xf32> to vector<57x64xbf16>
    %c1_21 = arith.constant 1 : index
    %c0_22 = arith.constant 0 : index
    %c0_23 = arith.constant 0 : index
    %39 = vector.load %arg6[%c1_21, %c0_22, %c0_23] : memref<3x64x64xbf16, #tpu.memory_space<vmem>>, vector<1x64x64xbf16>
    %40 = vector.shape_cast %39 : vector<1x64x64xbf16> to vector<64x64xbf16>
    %cst_24 = arith.constant dense<0.000000e+00> : vector<57x64xf32>
    %41 = tpu.matmul %38, %40, %cst_24 {dimension_numbers = #tpu.dot_dimension_numbers<[1], [0], [0], [1], [0, 0, 1, 1], [], []>} : vector<57x64xbf16>, vector<64x64xbf16>, vector<57x64xf32> -> vector<57x64xf32>
    %42 = arith.addf %36, %41 : vector<57x64xf32>
    %43 = vector.extract_strided_slice %31 {offsets = [4, 0], sizes = [57, 64], strides = [1, 1]} : vector<61x64xf32> to vector<57x64xf32>
    %44 = arith.truncf %43 : vector<57x64xf32> to vector<57x64xbf16>
    %c2_25 = arith.constant 2 : index
    %c0_26 = arith.constant 0 : index
    %c0_27 = arith.constant 0 : index
    %45 = vector.load %arg6[%c2_25, %c0_26, %c0_27] : memref<3x64x64xbf16, #tpu.memory_space<vmem>>, vector<1x64x64xbf16>
    %46 = vector.shape_cast %45 : vector<1x64x64xbf16> to vector<64x64xbf16>
    %cst_28 = arith.constant dense<0.000000e+00> : vector<57x64xf32>
    %47 = tpu.matmul %44, %46, %cst_28 {dimension_numbers = #tpu.dot_dimension_numbers<[1], [0], [0], [1], [0, 0, 1, 1], [], []>} : vector<57x64xbf16>, vector<64x64xbf16>, vector<57x64xf32> -> vector<57x64xf32>
    %48 = arith.addf %42, %47 : vector<57x64xf32>
    %c0_29 = arith.constant 0 : index
    %c0_30 = arith.constant 0 : index
    %49 = vector.load %arg7[%c0_29, %c0_30] : memref<1x64xf32, #tpu.memory_space<vmem>>, vector<1x64xf32>
    %50 = vector.broadcast %49 : vector<1x64xf32> to vector<57x64xf32>
    %51 = arith.addf %48, %50 : vector<57x64xf32>
    %cst_31 = arith.constant 0.000000e+00 : f32
    %52 = vector.broadcast %cst_31 : f32 to vector<57x64xf32>
    %53 = arith.maximumf %51, %52 : vector<57x64xf32>
    %c0_32 = arith.constant 0 : index
    %c0_33 = arith.constant 0 : index
    %54 = vector.load %arg8[%c0_32, %c0_33] : memref<1x64xf32, #tpu.memory_space<vmem>>, vector<1x64xf32>
    %55 = vector.broadcast %54 : vector<1x64xf32> to vector<57x64xf32>
    %56 = arith.mulf %53, %55 : vector<57x64xf32>
    %c0_34 = arith.constant 0 : index
    %c0_35 = arith.constant 0 : index
    %57 = vector.load %arg9[%c0_34, %c0_35] : memref<1x64xf32, #tpu.memory_space<vmem>>, vector<1x64xf32>
    %58 = vector.broadcast %57 : vector<1x64xf32> to vector<57x64xf32>
    %59 = arith.addf %56, %58 : vector<57x64xf32>
    %60 = vector.extract_strided_slice %59 {offsets = [0, 0], sizes = [55, 64], strides = [1, 1]} : vector<57x64xf32> to vector<55x64xf32>
    %61 = vector.extract_strided_slice %59 {offsets = [2, 0], sizes = [55, 64], strides = [1, 1]} : vector<57x64xf32> to vector<55x64xf32>
    %62 = arith.maximumf %60, %61 : vector<55x64xf32>
    %63 = vector.extract_strided_slice %62 {offsets = [0, 0], sizes = [47, 64], strides = [1, 1]} : vector<55x64xf32> to vector<47x64xf32>
    %64 = arith.truncf %63 : vector<47x64xf32> to vector<47x64xbf16>
    %c0_36 = arith.constant 0 : index
    %c0_37 = arith.constant 0 : index
    %c0_38 = arith.constant 0 : index
    %65 = vector.load %arg10[%c0_36, %c0_37, %c0_38] : memref<3x64x64xbf16, #tpu.memory_space<vmem>>, vector<1x64x64xbf16>
    %66 = vector.shape_cast %65 : vector<1x64x64xbf16> to vector<64x64xbf16>
    %cst_39 = arith.constant dense<0.000000e+00> : vector<47x64xf32>
    %67 = tpu.matmul %64, %66, %cst_39 {dimension_numbers = #tpu.dot_dimension_numbers<[1], [0], [0], [1], [0, 0, 1, 1], [], []>} : vector<47x64xbf16>, vector<64x64xbf16>, vector<47x64xf32> -> vector<47x64xf32>
    %68 = vector.extract_strided_slice %62 {offsets = [4, 0], sizes = [47, 64], strides = [1, 1]} : vector<55x64xf32> to vector<47x64xf32>
    %69 = arith.truncf %68 : vector<47x64xf32> to vector<47x64xbf16>
    %c1_40 = arith.constant 1 : index
    %c0_41 = arith.constant 0 : index
    %c0_42 = arith.constant 0 : index
    %70 = vector.load %arg10[%c1_40, %c0_41, %c0_42] : memref<3x64x64xbf16, #tpu.memory_space<vmem>>, vector<1x64x64xbf16>
    %71 = vector.shape_cast %70 : vector<1x64x64xbf16> to vector<64x64xbf16>
    %cst_43 = arith.constant dense<0.000000e+00> : vector<47x64xf32>
    %72 = tpu.matmul %69, %71, %cst_43 {dimension_numbers = #tpu.dot_dimension_numbers<[1], [0], [0], [1], [0, 0, 1, 1], [], []>} : vector<47x64xbf16>, vector<64x64xbf16>, vector<47x64xf32> -> vector<47x64xf32>
    %73 = arith.addf %67, %72 : vector<47x64xf32>
    %74 = vector.extract_strided_slice %62 {offsets = [8, 0], sizes = [47, 64], strides = [1, 1]} : vector<55x64xf32> to vector<47x64xf32>
    %75 = arith.truncf %74 : vector<47x64xf32> to vector<47x64xbf16>
    %c2_44 = arith.constant 2 : index
    %c0_45 = arith.constant 0 : index
    %c0_46 = arith.constant 0 : index
    %76 = vector.load %arg10[%c2_44, %c0_45, %c0_46] : memref<3x64x64xbf16, #tpu.memory_space<vmem>>, vector<1x64x64xbf16>
    %77 = vector.shape_cast %76 : vector<1x64x64xbf16> to vector<64x64xbf16>
    %cst_47 = arith.constant dense<0.000000e+00> : vector<47x64xf32>
    %78 = tpu.matmul %75, %77, %cst_47 {dimension_numbers = #tpu.dot_dimension_numbers<[1], [0], [0], [1], [0, 0, 1, 1], [], []>} : vector<47x64xbf16>, vector<64x64xbf16>, vector<47x64xf32> -> vector<47x64xf32>
    %79 = arith.addf %73, %78 : vector<47x64xf32>
    %c0_48 = arith.constant 0 : index
    %c0_49 = arith.constant 0 : index
    %80 = vector.load %arg11[%c0_48, %c0_49] : memref<1x64xf32, #tpu.memory_space<vmem>>, vector<1x64xf32>
    %81 = vector.broadcast %80 : vector<1x64xf32> to vector<47x64xf32>
    %82 = arith.addf %79, %81 : vector<47x64xf32>
    %cst_50 = arith.constant 0.000000e+00 : f32
    %83 = vector.broadcast %cst_50 : f32 to vector<47x64xf32>
    %84 = arith.maximumf %82, %83 : vector<47x64xf32>
    %85 = arith.truncf %84 : vector<47x64xf32> to vector<47x64xbf16>
    %c0_51 = arith.constant 0 : index
    %c0_52 = arith.constant 0 : index
    %86 = vector.load %arg12[%c0_51, %c0_52] : memref<64x32xbf16, #tpu.memory_space<vmem>>, vector<64x32xbf16>
    %cst_53 = arith.constant dense<0.000000e+00> : vector<47x32xf32>
    %87 = tpu.matmul %85, %86, %cst_53 {dimension_numbers = #tpu.dot_dimension_numbers<[1], [0], [0], [1], [0, 0, 1, 1], [], []>} : vector<47x64xbf16>, vector<64x32xbf16>, vector<47x32xf32> -> vector<47x32xf32>
    %c0_54 = arith.constant 0 : index
    %c0_55 = arith.constant 0 : index
    %88 = vector.load %arg13[%c0_54, %c0_55] : memref<1x32xf32, #tpu.memory_space<vmem>>, vector<1x32xf32>
    %89 = vector.broadcast %88 : vector<1x32xf32> to vector<47x32xf32>
    %90 = arith.addf %87, %89 : vector<47x32xf32>
    %91 = vector.extract_strided_slice %90 {offsets = [0, 0], sizes = [35, 32], strides = [1, 1]} : vector<47x32xf32> to vector<35x32xf32>
    %92 = vector.extract_strided_slice %90 {offsets = [4, 0], sizes = [35, 32], strides = [1, 1]} : vector<47x32xf32> to vector<35x32xf32>
    %93 = arith.maximumf %91, %92 : vector<35x32xf32>
    %94 = vector.extract_strided_slice %90 {offsets = [8, 0], sizes = [35, 32], strides = [1, 1]} : vector<47x32xf32> to vector<35x32xf32>
    %95 = arith.maximumf %93, %94 : vector<35x32xf32>
    %96 = vector.extract_strided_slice %90 {offsets = [12, 0], sizes = [35, 32], strides = [1, 1]} : vector<47x32xf32> to vector<35x32xf32>
    %97 = arith.maximumf %95, %96 : vector<35x32xf32>
    %98 = vector.extract_strided_slice %97 {offsets = [0, 0], sizes = [1, 32], strides = [1, 1]} : vector<35x32xf32> to vector<1x32xf32>
    %99 = vector.extract_strided_slice %97 {offsets = [32, 0], sizes = [1, 32], strides = [1, 1]} : vector<35x32xf32> to vector<1x32xf32>
    %100 = tpu.concatenate %98, %99 in 1 : vector<1x32xf32>, vector<1x32xf32> -> vector<1x64xf32>
    %c0_56 = arith.constant 0 : index
    %c0_57 = arith.constant 0 : index
    %101 = vector.load %arg14[%c0_56, %c0_57] : memref<1x64xf32, #tpu.memory_space<vmem>>, vector<1x64xf32>
    tpu.vector_store %arg14[%c0_56, %c0_57], %100 {strides = array<i32>} : memref<1x64xf32, #tpu.memory_space<vmem>>, vector<1x64xf32>,
    return
  }
  func.func @transform_0(%arg0: i32) -> (i32, i32) {
    %c0_i32 = arith.constant 0 : i32
    %c0_i32_0 = arith.constant 0 : i32
    %c0_i32_1 = arith.constant 0 : i32
    return %c0_i32, %c0_i32_0 : i32, i32
  }
  func.func @transform_1(%arg0: i32) -> (i32, i32, i32) {
    %c0_i32 = arith.constant 0 : i32
    %c0_i32_0 = arith.constant 0 : i32
    %c0_i32_1 = arith.constant 0 : i32
    %c0_i32_2 = arith.constant 0 : i32
    return %c0_i32, %c0_i32_0, %c0_i32_1 : i32, i32, i32
  }
  func.func @transform_2(%arg0: i32) -> (i32, i32) {
    %c0_i32 = arith.constant 0 : i32
    %c0_i32_0 = arith.constant 0 : i32
    %c0_i32_1 = arith.constant 0 : i32
    return %c0_i32, %c0_i32_0 : i32, i32
  }
  func.func @transform_3(%arg0: i32) -> (i32, i32) {
    %c0_i32 = arith.constant 0 : i32
    %c0_i32_0 = arith.constant 0 : i32
    %c0_i32_1 = arith.constant 0 : i32
    return %c0_i32, %c0_i32_0 : i32, i32
  }
  func.func @transform_4(%arg0: i32) -> (i32, i32) {
    %c0_i32 = arith.constant 0 : i32
    %c0_i32_0 = arith.constant 0 : i32
    %c0_i32_1 = arith.constant 0 : i32
    return %c0_i32, %c0_i32_0 : i32, i32
  }
  func.func @transform_5(%arg0: i32) -> (i32, i32, i32) {
    %c0_i32 = arith.constant 0 : i32
    %c0_i32_0 = arith.constant 0 : i32
    %c0_i32_1 = arith.constant 0 : i32
    %c0_i32_2 = arith.constant 0 : i32
    return %c0_i32, %c0_i32_0, %c0_i32_1 : i32, i32, i32
  }
  func.func @transform_6(%arg0: i32) -> (i32, i32) {
    %c0_i32 = arith.constant 0 : i32
    %c0_i32_0 = arith.constant 0 : i32
    %c0_i32_1 = arith.constant 0 : i32
    return %c0_i32, %c0_i32_0 : i32, i32
  }
  func.func @transform_7(%arg0: i32) -> (i32, i32) {
    %c0_i32 = arith.constant 0 : i32
    %c0_i32_0 = arith.constant 0 : i32
    %c0_i32_1 = arith.constant 0 : i32
    return %c0_i32, %c0_i32_0 : i32, i32
  }
  func.func @transform_8(%arg0: i32) -> (i32, i32) {
    %c0_i32 = arith.constant 0 : i32
    %c0_i32_0 = arith.constant 0 : i32
    %c0_i32_1 = arith.constant 0 : i32
    return %c0_i32, %c0_i32_0 : i32, i32
  }
  func.func @transform_9(%arg0: i32) -> (i32, i32, i32) {
    %c0_i32 = arith.constant 0 : i32
    %c0_i32_0 = arith.constant 0 : i32
    %c0_i32_1 = arith.constant 0 : i32
    %c0_i32_2 = arith.constant 0 : i32
    return %c0_i32, %c0_i32_0, %c0_i32_1 : i32, i32, i32
  }
  func.func @transform_10(%arg0: i32) -> (i32, i32) {
    %c0_i32 = arith.constant 0 : i32
    %c0_i32_0 = arith.constant 0 : i32
    %c0_i32_1 = arith.constant 0 : i32
    return %c0_i32, %c0_i32_0 : i32, i32
  }
  func.func @transform_11(%arg0: i32) -> (i32, i32) {
    %c0_i32 = arith.constant 0 : i32
    %c0_i32_0 = arith.constant 0 : i32
    %c0_i32_1 = arith.constant 0 : i32
    return %c0_i32, %c0_i32_0 : i32, i32
  }
  func.func @transform_12(%arg0: i32) -> (i32, i32) {
    %c0_i32 = arith.constant 0 : i32
    %c0_i32_0 = arith.constant 0 : i32
    %c0_i32_1 = arith.constant 0 : i32
    return %c0_i32, %c0_i32_0 : i32, i32
  }
  func.func @transform_13(%arg0: i32) -> (i32, i32) {
    %c0_i32 = arith.constant 0 : i32
    %c0_i32_0 = arith.constant 0 : i32
    %c0_i32_1 = arith.constant 0 : i32
    return %c0_i32, %c0_i32_0 : i32, i32
  }
}

</mosaic_0001>

<llo_original>
// kernel: tpu_custom_call.1
$region0: #{tpu_custom_call.1}
  #allocation0 [shape = 'u32[]', space=smem, size = 0x4, offset = 0x4, fixed_abs, tag = 'smem constant byte address 0x4 - core index']
  #allocation1 [shape = 'u32[72,128]{1,0:T(1,128)}', space=vmem, size = 0x9000, scoped, tag = 'internal scratch']
  %s0 = inlined_call_operand.vmem [shape: f32[64,32], index: 0, kind: input, shape index: {}]
  %s1 = inlined_call_operand.hbm [shape: bf16[3,32,64], index: 1, kind: input, shape index: {}]
  %s2 = inlined_call_operand.vmem [shape: f32[1,64], index: 2, kind: input, shape index: {}]
  %s3 = inlined_call_operand.vmem [shape: f32[1,64], index: 3, kind: input, shape index: {}]
  %s4 = inlined_call_operand.vmem [shape: f32[1,64], index: 4, kind: input, shape index: {}]
  %s5 = inlined_call_operand.vmem [shape: bf16[3,64,64], index: 5, kind: input, shape index: {}]
  %s6 = inlined_call_operand.vmem [shape: f32[1,64], index: 6, kind: input, shape index: {}]
  %s7 = inlined_call_operand.vmem [shape: f32[1,64], index: 7, kind: input, shape index: {}]
  %s8 = inlined_call_operand.vmem [shape: f32[1,64], index: 8, kind: input, shape index: {}]
  %s9 = inlined_call_operand.hbm [shape: bf16[3,64,64], index: 9, kind: input, shape index: {}]
  %s10 = inlined_call_operand.vmem [shape: f32[1,64], index: 10, kind: input, shape index: {}]
  %s11 = inlined_call_operand.vmem [shape: bf16[64,32], index: 11, kind: input, shape index: {}]
  %s12 = inlined_call_operand.vmem [shape: f32[1,32], index: 12, kind: input, shape index: {}]
  %s13 = inlined_call_operand.hbm [shape: f32[1,64], index: 13, kind: output, shape index: {}]
  %s14 = sld [smem:[#allocation0]]
  $region70: #{tpu_custom_call.1} parent=0
    _
  %s16 = ssub.s32 1, %s14
  %s17 = scalar_select 0, %s16, %s14
  $region1: #{tpu_custom_call.1} parent=0
    #allocation2 [shape = 'u8[24576]{0}', space=vmem, size = 0x6000, scoped, tag = 'input window, operand 1, single buffered']
    #allocation3 [shape = 's32[1]{0}', space=sflag, size = 0x4, scoped, tag = 'scoped memory for tpu_custom_call.1']
    #allocation4 [shape = 's32[1]{0}', space=sflag, size = 0x4, scoped, tag = 'scoped memory for tpu_custom_call.1']
    #allocation5 [shape = 'u8[49152]{0}', space=vmem, size = 0xc000, scoped, tag = 'input window, operand 9, single buffered']
    #allocation6 [shape = 's32[1]{0}', space=sflag, size = 0x4, scoped, tag = 'scoped memory for tpu_custom_call.1']
    #allocation7 [shape = 'u8[512]{0}', space=vmem, size = 0x400, scoped, tag = 'output window, operand 0, single buffered']
    %18 = vsyncpa [#allocation3], 0
    %19 = vsyncpa [#allocation6], 0
    %20 = vsyncpa [#allocation4], 0
    // Predicated region
    $region2: #{tpu_custom_call.1} parent=1 // pred_check
      _
    $region3: #{tpu_custom_call.1} parent=1 // pred_check_branch
      %22 = sbr.rel (0) target = $region5
    $region4: #{tpu_custom_call.1} parent=1 // pred_region
      _
    $region5: #{tpu_custom_call.1} parent=1 // pred_fallthru
      _
    // Predicated region
    $region6: #{tpu_custom_call.1} parent=1 // pred_check
      _
    $region7: #{tpu_custom_call.1} parent=1 // pred_check_branch
      %24 = sbr.rel (0) target = $region9
    $region8: #{tpu_custom_call.1} parent=1 // pred_region
      %26 = vsyncadd [#allocation3], 0
      %s27 = sshll.u32 %s1, 4
      %s28 = int_to_ptr.hbm [resolvable:$true] %s27
      %s29 = sshll.u32 [#allocation2], 4
      %s30 = int_to_ptr.vmem [resolvable:$true] %s29
      %35 = dma.hbm_to_vmem [thread:$0]  %s28, 768, %s30, [#allocation3], 64, 64, 4
    $region9: #{tpu_custom_call.1} parent=1 // pred_fallthru
      _
    // Predicated region
    $region10: #{tpu_custom_call.1} parent=1 // pred_check
      _
    $region11: #{tpu_custom_call.1} parent=1 // pred_check_branch
      %37 = sbr.rel (0) target = $region13
    $region12: #{tpu_custom_call.1} parent=1 // pred_region
      _
    $region13: #{tpu_custom_call.1} parent=1 // pred_fallthru
      _
    // Predicated region
    $region14: #{tpu_custom_call.1} parent=1 // pred_check
      _
    $region15: #{tpu_custom_call.1} parent=1 // pred_check_branch
      %39 = sbr.rel (0) target = $region17
    $region16: #{tpu_custom_call.1} parent=1 // pred_region
      _
    $region17: #{tpu_custom_call.1} parent=1 // pred_fallthru
      _
    // Predicated region
    $region18: #{tpu_custom_call.1} parent=1 // pred_check
      _
    $region19: #{tpu_custom_call.1} parent=1 // pred_check_branch
      %41 = sbr.rel (0) target = $region21
    $region20: #{tpu_custom_call.1} parent=1 // pred_region
      _
    $region21: #{tpu_custom_call.1} parent=1 // pred_fallthru
      _
    // Predicated region
    $region22: #{tpu_custom_call.1} parent=1 // pred_check
      _
    $region23: #{tpu_custom_call.1} parent=1 // pred_check_branch
      %43 = sbr.rel (0) target = $region25
    $region24: #{tpu_custom_call.1} parent=1 // pred_region
      _
    $region25: #{tpu_custom_call.1} parent=1 // pred_fallthru
      _
    // Predicated region
    $region26: #{tpu_custom_call.1} parent=1 // pred_check
      _
    $region27: #{tpu_custom_call.1} parent=1 // pred_check_branch
      %45 = sbr.rel (0) target = $region29
    $region28: #{tpu_custom_call.1} parent=1 // pred_region
      _
    $region29: #{tpu_custom_call.1} parent=1 // pred_fallthru
      _
    // Predicated region
    $region30: #{tpu_custom_call.1} parent=1 // pred_check
      _
    $region31: #{tpu_custom_call.1} parent=1 // pred_check_branch
      %47 = sbr.rel (0) target = $region33
    $region32: #{tpu_custom_call.1} parent=1 // pred_region
      _
    $region33: #{tpu_custom_call.1} parent=1 // pred_fallthru
      _
    // Predicated region
    $region34: #{tpu_custom_call.1} parent=1 // pred_check
      _
    $region35: #{tpu_custom_call.1} parent=1 // pred_check_branch
      %49 = sbr.rel (0) target = $region37
    $region36: #{tpu_custom_call.1} parent=1 // pred_region
      _
    $region37: #{tpu_custom_call.1} parent=1 // pred_fallthru
      _
    // Predicated region
    $region38: #{tpu_custom_call.1} parent=1 // pred_check
      _
    $region39: #{tpu_custom_call.1} parent=1 // pred_check_branch
      %51 = sbr.rel (0) target = $region41
    $region40: #{tpu_custom_call.1} parent=1 // pred_region
      %53 = vsyncadd [#allocation6], 0
      %s54 = sshll.u32 %s9, 4
      %s55 = int_to_ptr.hbm [resolvable:$true] %s54
      %s56 = sshll.u32 [#allocation5], 4
      %s57 = int_to_ptr.vmem [resolvable:$true] %s56
      %62 = dma.hbm_to_vmem [thread:$0]  %s55, 1536, %s57, [#allocation6], 64, 64, 4
    $region41: #{tpu_custom_call.1} parent=1 // pred_fallthru
      _
    // Predicated region
    $region42: #{tpu_custom_call.1} parent=1 // pred_check
      _
    $region43: #{tpu_custom_call.1} parent=1 // pred_check_branch
      %64 = sbr.rel (0) target = $region45
    $region44: #{tpu_custom_call.1} parent=1 // pred_region
      _
    $region45: #{tpu_custom_call.1} parent=1 // pred_fallthru
      _
    // Predicated region
    $region46: #{tpu_custom_call.1} parent=1 // pred_check
      _
    $region47: #{tpu_custom_call.1} parent=1 // pred_check_branch
      %66 = sbr.rel (0) target = $region49
    $region48: #{tpu_custom_call.1} parent=1 // pred_region
      _
    $region49: #{tpu_custom_call.1} parent=1 // pred_fallthru
      _
    // Predicated region
    $region50: #{tpu_custom_call.1} parent=1 // pred_check
      _
    $region51: #{tpu_custom_call.1} parent=1 // pred_check_branch
      %68 = sbr.rel (0) target = $region53
    $region52: #{tpu_custom_call.1} parent=1 // pred_region
      _
    $region53: #{tpu_custom_call.1} parent=1 // pred_fallthru
      _
    // Predicated region
    $region54: #{tpu_custom_call.1} parent=1 // pred_check
      _
    $region55: #{tpu_custom_call.1} parent=1 // pred_check_branch
      %70 = sbr.rel (0) target = $region57
    $region56: #{tpu_custom_call.1} parent=1 // pred_region
      %72 = dma.done [#allocation3], 768
    $region57: #{tpu_custom_call.1} parent=1 // pred_fallthru
      _
    // Predicated region
    $region58: #{tpu_custom_call.1} parent=1 // pred_check
      _
    $region59: #{tpu_custom_call.1} parent=1 // pred_check_branch
      %74 = sbr.rel (0) target = $region61
    $region60: #{tpu_custom_call.1} parent=1 // pred_region
      %76 = dma.done [#allocation6], 1536
    $region61: #{tpu_custom_call.1} parent=1 // pred_fallthru
      _
    %v78 = vld [vmem:[%s0] sm:$0xff]
    %v79 = vld [vmem:[%s0 + $0x8] sm:$0xff]
    %v80 = vld [vmem:[%s0 + $0x10] sm:$0xff]
    %v81 = vld [vmem:[%s0 + $0x18] sm:$0xff]
    %v82 = vld [vmem:[%s0 + $0x20] sm:$0xff]
    %v83 = vld [vmem:[%s0 + $0x28] sm:$0xff]
    %v84 = vld [vmem:[%s0 + $0x30] sm:$0xff]
    %v85 = vld [vmem:[%s0 + $0x38] sm:$0xff]
    %v86 = vpack.c.bf16 %v79, %v78
    %v87 = vpack.c.bf16 %v81, %v80
    %v88 = vpack.c.bf16 %v83, %v82
    %v89 = vpack.c.bf16 %v85, %v84
    %v90 = vld [vmem:[#allocation2] sm:$0xf]
    %v91 = vld [vmem:[#allocation2 + $0x4] sm:$0xf]
    %v92 = vld [vmem:[#allocation2 + $0x8] sm:$0xf]
    %v93 = vld [vmem:[#allocation2 + $0xc] sm:$0xf]
    %s94 = scalar_lea.vmem [#allocation2], 16
    %v95 = vld [vmem:[%s94] sm:$0xf]
    %v96 = vld [vmem:[%s94 + $0x4] sm:$0xf]
    %v97 = vld [vmem:[%s94 + $0x8] sm:$0xf]
    %v98 = vld [vmem:[%s94 + $0xc] sm:$0xf]
    %vm99 = vsmask.f32 7424
    %v101 = vshrl.u32 %v86, 16
    %v103 = vshll.u32 %v86, 16
    %v105 = vrot.slane %v103, 1
    %v106 = vor.u32 %v101, %v105
    %v108 = vshll.u32 %v87, 16
    %v110 = vrot.slane %v108, 1
    %v111 = vsel %vm99, %v106, %v110
    %v112 = vshrl.u32 %v87, 16
    %v114 = vor.u32 %v112, %v110
    %v116 = vshll.u32 %v88, 16
    %v118 = vrot.slane %v116, 1
    %v119 = vsel %vm99, %v114, %v118
    %v120 = vshrl.u32 %v88, 16
    %v122 = vor.u32 %v120, %v118
    %v124 = vshll.u32 %v89, 16
    %v126 = vrot.slane %v124, 1
    %v127 = vsel %vm99, %v122, %v126
    %v128 = vshrl.u32 %v89, 16
    %v130 = vor.u32 %v128, %v126
    %v135 = vunpack.c.l.b16 %v95
    %v136 = vunpack.c.l.b16 %v96
    %v137 = vunpack.c.l.b16 %v97
    %v138 = vunpack.c.l.b16 %v98
    %v139 = vpack.c.b16 %v136, %v135
    %v140 = vpack.c.b16 %v138, %v137
    %vm143 = vcmask 261120
    %v145 = vsel %vm143, %v111, 0
    %v148 = vsel %vm143, %v119, 0
    %v151 = vsel %vm143, %v127, 0
    %v154 = vsel %vm143, %v130, 0
    %156 = vmatpush.bf16.msra.mxu0 0
    %157 = vmatpush.bf16.msra.mxu0 0
    %158 = vmatpush.bf16.msra.mxu0 0
    %159 = vmatpush.bf16.msra.mxu0 0
    %160 = vmatpush.bf16.msra.mxu0 0
    %161 = vmatpush.bf16.msra.mxu0 0
    %162 = vmatpush.bf16.msra.mxu0 %v140
    %163 = vmatpush.bf16.msra.mxu0 %v139
    %164 = vmatmul.bf16.gmra.mxu0 %v145
    %v165 = vpop.f32.mrf.mxu0
    %v166 = vadd.f32 0.0, %v165
    %v167 = vpop.f32.mrf.mxu0
    %v168 = vadd.f32 0.0, %v167
    %169 = vmatmul.bf16.gmra.mxu0 %v148
    %v170 = vpop.f32.mrf.mxu0
    %v171 = vadd.f32 0.0, %v170
    %v172 = vpop.f32.mrf.mxu0
    %v173 = vadd.f32 0.0, %v172
    %174 = vmatmul.bf16.gmra.mxu0 %v151
    %v175 = vpop.f32.mrf.mxu0
    %v176 = vadd.f32 0.0, %v175
    %v177 = vpop.f32.mrf.mxu0
    %v178 = vadd.f32 0.0, %v177
    %179 = vmatmul.bf16.gmra.mxu0 %v154
    %v180 = vpop.f32.mrf.mxu0
    %v181 = vadd.f32 0.0, %v180
    %v182 = vpop.f32.mrf.mxu0
    %v183 = vadd.f32 0.0, %v182
    %184 = vdwg.mxu0
    %v189 = vunpack.c.l.b16 %v90
    %v190 = vunpack.c.l.b16 %v91
    %v191 = vunpack.c.l.b16 %v92
    %v192 = vunpack.c.l.b16 %v93
    %v193 = vpack.c.b16 %v190, %v189
    %v194 = vpack.c.b16 %v192, %v191
    %v197 = vsel %vm143, %v86, 0
    %v199 = vsel %vm143, %v87, 0
    %v201 = vsel %vm143, %v88, 0
    %v203 = vsel %vm143, %v89, 0
    %205 = vmatpush.bf16.msra.mxu0 0
    %206 = vmatpush.bf16.msra.mxu0 0
    %207 = vmatpush.bf16.msra.mxu0 0
    %208 = vmatpush.bf16.msra.mxu0 0
    %209 = vmatpush.bf16.msra.mxu0 0
    %210 = vmatpush.bf16.msra.mxu0 0
    %211 = vmatpush.bf16.msra.mxu0 %v194
    %212 = vmatpush.bf16.msra.mxu0 %v193
    %213 = vmatmul.bf16.gmra.mxu0 %v197
    %v214 = vpop.f32.mrf.mxu0
    %v215 = vadd.f32 %v166, %v214
    %v216 = vpop.f32.mrf.mxu0
    %v217 = vadd.f32 %v168, %v216
    %218 = vmatmul.bf16.gmra.mxu0 %v199
    %v219 = vpop.f32.mrf.mxu0
    %v220 = vadd.f32 %v171, %v219
    %v221 = vpop.f32.mrf.mxu0
    %v222 = vadd.f32 %v173, %v221
    %223 = vmatmul.bf16.gmra.mxu0 %v201
    %v224 = vpop.f32.mrf.mxu0
    %v225 = vadd.f32 %v176, %v224
    %v226 = vpop.f32.mrf.mxu0
    %v227 = vadd.f32 %v178, %v226
    %228 = vmatmul.bf16.gmra.mxu0 %v203
    %v229 = vpop.f32.mrf.mxu0
    %v230 = vadd.f32 %v181, %v229
    %v231 = vpop.f32.mrf.mxu0
    %v232 = vadd.f32 %v183, %v231
    %233 = vdwg.mxu0
    %s234 = scalar_lea.vmem [#allocation2], 32
    %v235 = vld [vmem:[%s234] sm:$0xf]
    %v236 = vld [vmem:[%s234 + $0x4] sm:$0xf]
    %v237 = vld [vmem:[%s234 + $0x8] sm:$0xf]
    %v238 = vld [vmem:[%s234 + $0xc] sm:$0xf]
    %vm243 = vcmask 1046528
    %v244 = vrot.slane %v86, 1
    %v245 = vrot.slane %v87, 1
    %v246 = vsel %vm243, %v244, %v245
    %v247 = vrot.slane %v88, 1
    %v248 = vsel %vm243, %v245, %v247
    %v249 = vrot.slane %v89, 1
    %v250 = vsel %vm243, %v247, %v249
    %v255 = vunpack.c.l.b16 %v235
    %v256 = vunpack.c.l.b16 %v236
    %v257 = vunpack.c.l.b16 %v237
    %v258 = vunpack.c.l.b16 %v238
    %v259 = vpack.c.b16 %v256, %v255
    %v260 = vpack.c.b16 %v258, %v257
    %v264 = vsel %vm143, %v246, 0
    %v267 = vsel %vm143, %v248, 0
    %v270 = vsel %vm143, %v250, 0
    %v273 = vsel %vm143, %v249, 0
    %275 = vmatpush.bf16.msra.mxu0 0
    %276 = vmatpush.bf16.msra.mxu0 0
    %277 = vmatpush.bf16.msra.mxu0 0
    %278 = vmatpush.bf16.msra.mxu0 0
    %279 = vmatpush.bf16.msra.mxu0 0
    %280 = vmatpush.bf16.msra.mxu0 0
    %281 = vmatpush.bf16.msra.mxu0 %v260
    %282 = vmatpush.bf16.msra.mxu0 %v259
    %283 = vmatmul.bf16.gmra.mxu0 %v264
    %v284 = vpop.f32.mrf.mxu0
    %v285 = vadd.f32 0.0, %v284
    %v286 = vpop.f32.mrf.mxu0
    %v287 = vadd.f32 0.0, %v286
    %288 = vmatmul.bf16.gmra.mxu0 %v267
    %v289 = vpop.f32.mrf.mxu0
    %v290 = vadd.f32 0.0, %v289
    %v291 = vpop.f32.mrf.mxu0
    %v292 = vadd.f32 0.0, %v291
    %293 = vmatmul.bf16.gmra.mxu0 %v270
    %v294 = vpop.f32.mrf.mxu0
    %v295 = vadd.f32 0.0, %v294
    %v296 = vpop.f32.mrf.mxu0
    %v297 = vadd.f32 0.0, %v296
    %298 = vmatmul.bf16.gmra.mxu0 %v273
    %v299 = vpop.f32.mrf.mxu0
    %v300 = vadd.f32 0.0, %v299
    %v301 = vpop.f32.mrf.mxu0
    %v302 = vadd.f32 0.0, %v301
    %303 = vdwg.mxu0
    %v304 = vadd.f32 %v215, %v285
    %v305 = vadd.f32 %v217, %v287
    %v306 = vadd.f32 %v220, %v290
    %v307 = vadd.f32 %v222, %v292
    %v308 = vadd.f32 %v225, %v295
    %v309 = vadd.f32 %v227, %v297
    %v310 = vadd.f32 %v230, %v300
    %v311 = vadd.f32 %v232, %v302
    %v312 = vld [vmem:[%s2] sm:$0x1]
    %v314 = vperm.slane %v312, 0
    %v316 = vadd.f32 %v304, %v314
    %v317 = vadd.f32 %v305, %v314
    %v318 = vadd.f32 %v306, %v314
    %v319 = vadd.f32 %v307, %v314
    %v320 = vadd.f32 %v308, %v314
    %v321 = vadd.f32 %v309, %v314
    %v322 = vadd.f32 %v310, %v314
    %v323 = vadd.f32 %v311, %v314
    %v324 = vmax.f32 %v316, 0.0
    %v325 = vmax.f32 %v317, 0.0
    %v326 = vmax.f32 %v318, 0.0
    %v327 = vmax.f32 %v319, 0.0
    %v328 = vmax.f32 %v320, 0.0
    %v329 = vmax.f32 %v321, 0.0
    %v330 = vmax.f32 %v322, 0.0
    %v331 = vmax.f32 %v323, 0.0
    %v332 = vld [vmem:[%s3] sm:$0x1]
    %v334 = vperm.slane %v332, 0
    %v336 = vmul.f32 %v324, %v334
    %v337 = vmul.f32 %v325, %v334
    %v338 = vmul.f32 %v326, %v334
    %v339 = vmul.f32 %v327, %v334
    %v340 = vmul.f32 %v328, %v334
    %v341 = vmul.f32 %v329, %v334
    %v342 = vmul.f32 %v330, %v334
    %v343 = vmul.f32 %v331, %v334
    %v344 = vld [vmem:[%s4] sm:$0x1]
    %v346 = vperm.slane %v344, 0
    %v348 = vadd.f32 %v336, %v346
    %v349 = vadd.f32 %v337, %v346
    %v350 = vadd.f32 %v338, %v346
    %v351 = vadd.f32 %v339, %v346
    %v352 = vadd.f32 %v340, %v346
    %v353 = vadd.f32 %v341, %v346
    %v354 = vadd.f32 %v342, %v346
    %v355 = vadd.f32 %v343, %v346
    %vm364 = vcmask 1046528
    %v365 = vrot.slane %v348, 1
    %v366 = vrot.slane %v349, 1
    %v367 = vsel %vm364, %v365, %v366
    %v368 = vrot.slane %v350, 1
    %v369 = vsel %vm364, %v366, %v368
    %v370 = vrot.slane %v351, 1
    %v371 = vsel %vm364, %v368, %v370
    %v372 = vrot.slane %v352, 1
    %v373 = vsel %vm364, %v370, %v372
    %v374 = vrot.slane %v353, 1
    %v375 = vsel %vm364, %v372, %v374
    %v376 = vrot.slane %v354, 1
    %v377 = vsel %vm364, %v374, %v376
    %v378 = vrot.slane %v355, 1
    %v379 = vsel %vm364, %v376, %v378
    %v388 = vmax.f32 %v348, %v367
    %v389 = vmax.f32 %v349, %v369
    %v390 = vmax.f32 %v350, %v371
    %v391 = vmax.f32 %v351, %v373
    %v392 = vmax.f32 %v352, %v375
    %v393 = vmax.f32 %v353, %v377
    %v394 = vmax.f32 %v354, %v379
    %v395 = vmax.f32 %v355, %v378
    %v396 = vpack.c.bf16 %v389, %v388
    %v397 = vpack.c.bf16 %v391, %v390
    %v398 = vpack.c.bf16 %v393, %v392
    %v399 = vpack.c.bf16 %v395, %v394
    %v400 = vld [vmem:[%s5] sm:$0xf]
    %v401 = vld [vmem:[%s5 + $0x4] sm:$0xf]
    %v402 = vld [vmem:[%s5 + $0x8] sm:$0xf]
    %v403 = vld [vmem:[%s5 + $0xc] sm:$0xf]
    %v404 = vld [vmem:[%s5 + $0x10] sm:$0xf]
    %v405 = vld [vmem:[%s5 + $0x14] sm:$0xf]
    %v406 = vld [vmem:[%s5 + $0x18] sm:$0xf]
    %v407 = vld [vmem:[%s5 + $0x1c] sm:$0xf]
    %s408 = scalar_lea.vmem %s5, 32
    %v409 = vld [vmem:[%s408] sm:$0xf]
    %v410 = vld [vmem:[%s408 + $0x4] sm:$0xf]
    %v411 = vld [vmem:[%s408 + $0x8] sm:$0xf]
    %v412 = vld [vmem:[%s408 + $0xc] sm:$0xf]
    %v413 = vld [vmem:[%s408 + $0x10] sm:$0xf]
    %v414 = vld [vmem:[%s408 + $0x14] sm:$0xf]
    %v415 = vld [vmem:[%s408 + $0x18] sm:$0xf]
    %v416 = vld [vmem:[%s408 + $0x1c] sm:$0xf]
    %v421 = vrot.slane %v396, 1
    %v422 = vrot.slane %v397, 1
    %v423 = vsel %vm243, %v421, %v422
    %v424 = vrot.slane %v398, 1
    %v425 = vsel %vm243, %v422, %v424
    %v426 = vrot.slane %v399, 1
    %v427 = vsel %vm243, %v424, %v426
    %v436 = vunpack.c.l.b16 %v409
    %v437 = vunpack.c.l.b16 %v410
    %v438 = vunpack.c.l.b16 %v411
    %v439 = vunpack.c.l.b16 %v412
    %v440 = vunpack.c.l.b16 %v413
    %v441 = vunpack.c.l.b16 %v414
    %v442 = vunpack.c.l.b16 %v415
    %v443 = vunpack.c.l.b16 %v416
    %v444 = vpack.c.b16 %v437, %v436
    %v445 = vpack.c.b16 %v439, %v438
    %v446 = vpack.c.b16 %v441, %v440
    %v447 = vpack.c.b16 %v443, %v442
    %vm452 = vcmask 523264
    %v454 = vsel %vm452, %v423, 0
    %v457 = vsel %vm452, %v425, 0
    %v460 = vsel %vm452, %v427, 0
    %v463 = vsel %vm452, %v426, 0
    %465 = vmatpush.bf16.msra.mxu0 0
    %466 = vmatpush.bf16.msra.mxu0 0
    %467 = vmatpush.bf16.msra.mxu0 0
    %468 = vmatpush.bf16.msra.mxu0 0
    %469 = vmatpush.bf16.msra.mxu0 %v447
    %470 = vmatpush.bf16.msra.mxu0 %v446
    %471 = vmatpush.bf16.msra.mxu0 %v445
    %472 = vmatpush.bf16.msra.mxu0 %v444
    %473 = vmatmul.bf16.gmra.mxu0 %v454
    %v474 = vpop.f32.mrf.mxu0
    %v475 = vadd.f32 0.0, %v474
    %v476 = vpop.f32.mrf.mxu0
    %v477 = vadd.f32 0.0, %v476
    %478 = vmatmul.bf16.gmra.mxu0 %v457
    %v479 = vpop.f32.mrf.mxu0
    %v480 = vadd.f32 0.0, %v479
    %v481 = vpop.f32.mrf.mxu0
    %v482 = vadd.f32 0.0, %v481
    %483 = vmatmul.bf16.gmra.mxu0 %v460
    %v484 = vpop.f32.mrf.mxu0
    %v485 = vadd.f32 0.0, %v484
    %v486 = vpop.f32.mrf.mxu0
    %v487 = vadd.f32 0.0, %v486
    %488 = vmatmul.bf16.gmra.mxu0 %v463
    %v489 = vpop.f32.mrf.mxu0
    %v490 = vadd.f32 0.0, %v489
    %v491 = vpop.f32.mrf.mxu0
    %v492 = vadd.f32 0.0, %v491
    %493 = vdwg.mxu0
    %v502 = vunpack.c.l.b16 %v400
    %v503 = vunpack.c.l.b16 %v401
    %v504 = vunpack.c.l.b16 %v402
    %v505 = vunpack.c.l.b16 %v403
    %v506 = vunpack.c.l.b16 %v404
    %v507 = vunpack.c.l.b16 %v405
    %v508 = vunpack.c.l.b16 %v406
    %v509 = vunpack.c.l.b16 %v407
    %v510 = vpack.c.b16 %v503, %v502
    %v511 = vpack.c.b16 %v505, %v504
    %v512 = vpack.c.b16 %v507, %v506
    %v513 = vpack.c.b16 %v509, %v508
    %v519 = vsel %vm452, %v396, 0
    %v522 = vsel %vm452, %v397, 0
    %v525 = vsel %vm452, %v398, 0
    %v528 = vsel %vm452, %v399, 0
    %530 = vmatpush.bf16.msra.mxu0 0
    %531 = vmatpush.bf16.msra.mxu0 0
    %532 = vmatpush.bf16.msra.mxu0 0
    %533 = vmatpush.bf16.msra.mxu0 0
    %534 = vmatpush.bf16.msra.mxu0 %v513
    %535 = vmatpush.bf16.msra.mxu0 %v512
    %536 = vmatpush.bf16.msra.mxu0 %v511
    %537 = vmatpush.bf16.msra.mxu0 %v510
    %538 = vmatmul.bf16.gmra.mxu0 %v519
    %v539 = vpop.f32.mrf.mxu0
    %v540 = vadd.f32 %v475, %v539
    %v541 = vpop.f32.mrf.mxu0
    %v542 = vadd.f32 %v477, %v541
    %543 = vmatmul.bf16.gmra.mxu0 %v522
    %v544 = vpop.f32.mrf.mxu0
    %v545 = vadd.f32 %v480, %v544
    %v546 = vpop.f32.mrf.mxu0
    %v547 = vadd.f32 %v482, %v546
    %548 = vmatmul.bf16.gmra.mxu0 %v525
    %v549 = vpop.f32.mrf.mxu0
    %v550 = vadd.f32 %v485, %v549
    %v551 = vpop.f32.mrf.mxu0
    %v552 = vadd.f32 %v487, %v551
    %553 = vmatmul.bf16.gmra.mxu0 %v528
    %v554 = vpop.f32.mrf.mxu0
    %v555 = vadd.f32 %v490, %v554
    %v556 = vpop.f32.mrf.mxu0
    %v557 = vadd.f32 %v492, %v556
    %558 = vdwg.mxu0
    %s559 = scalar_lea.vmem %s5, 64
    %v560 = vld [vmem:[%s559] sm:$0xf]
    %v561 = vld [vmem:[%s559 + $0x4] sm:$0xf]
    %v562 = vld [vmem:[%s559 + $0x8] sm:$0xf]
    %v563 = vld [vmem:[%s559 + $0xc] sm:$0xf]
    %v564 = vld [vmem:[%s559 + $0x10] sm:$0xf]
    %v565 = vld [vmem:[%s559 + $0x14] sm:$0xf]
    %v566 = vld [vmem:[%s559 + $0x18] sm:$0xf]
    %v567 = vld [vmem:[%s559 + $0x1c] sm:$0xf]
    %vm568 = vcmask 1045504
    %v569 = vrot.slane %v396, 2
    %v570 = vrot.slane %v397, 2
    %v571 = vsel %vm568, %v569, %v570
    %v572 = vrot.slane %v398, 2
    %v573 = vsel %vm568, %v570, %v572
    %v574 = vrot.slane %v399, 2
    %v575 = vsel %vm568, %v572, %v574
    %v584 = vunpack.c.l.b16 %v560
    %v585 = vunpack.c.l.b16 %v561
    %v586 = vunpack.c.l.b16 %v562
    %v587 = vunpack.c.l.b16 %v563
    %v588 = vunpack.c.l.b16 %v564
    %v589 = vunpack.c.l.b16 %v565
    %v590 = vunpack.c.l.b16 %v566
    %v591 = vunpack.c.l.b16 %v567
    %v592 = vpack.c.b16 %v585, %v584
    %v593 = vpack.c.b16 %v587, %v586
    %v594 = vpack.c.b16 %v589, %v588
    %v595 = vpack.c.b16 %v591, %v590
    %v601 = vsel %vm452, %v571, 0
    %v604 = vsel %vm452, %v573, 0
    %v607 = vsel %vm452, %v575, 0
    %v610 = vsel %vm452, %v574, 0
    %612 = vmatpush.bf16.msra.mxu0 0
    %613 = vmatpush.bf16.msra.mxu0 0
    %614 = vmatpush.bf16.msra.mxu0 0
    %615 = vmatpush.bf16.msra.mxu0 0
    %616 = vmatpush.bf16.msra.mxu0 %v595
    %617 = vmatpush.bf16.msra.mxu0 %v594
    %618 = vmatpush.bf16.msra.mxu0 %v593
    %619 = vmatpush.bf16.msra.mxu0 %v592
    %620 = vmatmul.bf16.gmra.mxu0 %v601
    %v621 = vpop.f32.mrf.mxu0
    %v622 = vadd.f32 0.0, %v621
    %v623 = vpop.f32.mrf.mxu0
    %v624 = vadd.f32 0.0, %v623
    %625 = vmatmul.bf16.gmra.mxu0 %v604
    %v626 = vpop.f32.mrf.mxu0
    %v627 = vadd.f32 0.0, %v626
    %v628 = vpop.f32.mrf.mxu0
    %v629 = vadd.f32 0.0, %v628
    %630 = vmatmul.bf16.gmra.mxu0 %v607
    %v631 = vpop.f32.mrf.mxu0
    %v632 = vadd.f32 0.0, %v631
    %v633 = vpop.f32.mrf.mxu0
    %v634 = vadd.f32 0.0, %v633
    %635 = vmatmul.bf16.gmra.mxu0 %v610
    %v636 = vpop.f32.mrf.mxu0
    %v637 = vadd.f32 0.0, %v636
    %v638 = vpop.f32.mrf.mxu0
    %v639 = vadd.f32 0.0, %v638
    %640 = vdwg.mxu0
    %v641 = vadd.f32 %v540, %v622
    %v642 = vadd.f32 %v542, %v624
    %v643 = vadd.f32 %v545, %v627
    %v644 = vadd.f32 %v547, %v629
    %v645 = vadd.f32 %v550, %v632
    %v646 = vadd.f32 %v552, %v634
    %v647 = vadd.f32 %v555, %v637
    %v648 = vadd.f32 %v557, %v639
    %v649 = vld [vmem:[%s6] sm:$0x1]
    %v651 = vperm.slane %v649, 0
    %v653 = vadd.f32 %v641, %v651
    %v654 = vadd.f32 %v642, %v651
    %v655 = vadd.f32 %v643, %v651
    %v656 = vadd.f32 %v644, %v651
    %v657 = vadd.f32 %v645, %v651
    %v658 = vadd.f32 %v646, %v651
    %v659 = vadd.f32 %v647, %v651
    %v660 = vadd.f32 %v648, %v651
    %v661 = vmax.f32 %v653, 0.0
    %v662 = vmax.f32 %v654, 0.0
    %v663 = vmax.f32 %v655, 0.0
    %v664 = vmax.f32 %v656, 0.0
    %v665 = vmax.f32 %v657, 0.0
    %v666 = vmax.f32 %v658, 0.0
    %v667 = vmax.f32 %v659, 0.0
    %v668 = vmax.f32 %v660, 0.0
    %v669 = vld [vmem:[%s7] sm:$0x1]
    %v671 = vperm.slane %v669, 0
    %v673 = vmul.f32 %v661, %v671
    %v674 = vmul.f32 %v662, %v671
    %v675 = vmul.f32 %v663, %v671
    %v676 = vmul.f32 %v664, %v671
    %v677 = vmul.f32 %v665, %v671
    %v678 = vmul.f32 %v666, %v671
    %v679 = vmul.f32 %v667, %v671
    %v680 = vmul.f32 %v668, %v671
    %v681 = vld [vmem:[%s8] sm:$0x1]
    %v683 = vperm.slane %v681, 0
    %v685 = vadd.f32 %v673, %v683
    %v686 = vadd.f32 %v674, %v683
    %v687 = vadd.f32 %v675, %v683
    %v688 = vadd.f32 %v676, %v683
    %v689 = vadd.f32 %v677, %v683
    %v690 = vadd.f32 %v678, %v683
    %v691 = vadd.f32 %v679, %v683
    %v692 = vadd.f32 %v680, %v683
    %vm701 = vcmask 1045504
    %v702 = vrot.slane %v685, 2
    %v703 = vrot.slane %v686, 2
    %v704 = vsel %vm701, %v702, %v703
    %v705 = vrot.slane %v687, 2
    %v706 = vsel %vm701, %v703, %v705
    %v707 = vrot.slane %v688, 2
    %v708 = vsel %vm701, %v705, %v707
    %v709 = vrot.slane %v689, 2
    %v710 = vsel %vm701, %v707, %v709
    %v711 = vrot.slane %v690, 2
    %v712 = vsel %vm701, %v709, %v711
    %v713 = vrot.slane %v691, 2
    %v714 = vsel %vm701, %v711, %v713
    %v715 = vrot.slane %v692, 2
    %v716 = vsel %vm701, %v713, %v715
    %v724 = vmax.f32 %v685, %v704
    %v725 = vmax.f32 %v686, %v706
    %v726 = vmax.f32 %v687, %v708
    %v727 = vmax.f32 %v688, %v710
    %v728 = vmax.f32 %v689, %v712
    %v729 = vmax.f32 %v690, %v714
    %v730 = vmax.f32 %v691, %v716
    %v731 = vpack.c.bf16 %v725, %v724
    %v732 = vpack.c.bf16 %v727, %v726
    %v733 = vpack.c.bf16 %v729, %v728
    %v734 = vld [vmem:[#allocation5] sm:$0xf]
    %v735 = vld [vmem:[#allocation5 + $0x4] sm:$0xf]
    %v736 = vld [vmem:[#allocation5 + $0x8] sm:$0xf]
    %v737 = vld [vmem:[#allocation5 + $0xc] sm:$0xf]
    %v738 = vld [vmem:[#allocation5 + $0x10] sm:$0xf]
    %v739 = vld [vmem:[#allocation5 + $0x14] sm:$0xf]
    %v740 = vld [vmem:[#allocation5 + $0x18] sm:$0xf]
    %v741 = vld [vmem:[#allocation5 + $0x1c] sm:$0xf]
    %v742 = vpack.c.bf16 %v730, %v730
    %s743 = scalar_lea.vmem [#allocation5], 32
    %v744 = vld [vmem:[%s743] sm:$0xf]
    %v745 = vld [vmem:[%s743 + $0x4] sm:$0xf]
    %v746 = vld [vmem:[%s743 + $0x8] sm:$0xf]
    %v747 = vld [vmem:[%s743 + $0xc] sm:$0xf]
    %v748 = vld [vmem:[%s743 + $0x10] sm:$0xf]
    %v749 = vld [vmem:[%s743 + $0x14] sm:$0xf]
    %v750 = vld [vmem:[%s743 + $0x18] sm:$0xf]
    %v751 = vld [vmem:[%s743 + $0x1c] sm:$0xf]
    %v756 = vrot.slane %v731, 2
    %v757 = vrot.slane %v732, 2
    %v758 = vsel %vm568, %v756, %v757
    %v759 = vrot.slane %v733, 2
    %v760 = vsel %vm568, %v757, %v759
    %v761 = vrot.slane %v742, 2
    %v762 = vsel %vm568, %v759, %v761
    %v771 = vunpack.c.l.b16 %v744
    %v772 = vunpack.c.l.b16 %v745
    %v773 = vunpack.c.l.b16 %v746
    %v774 = vunpack.c.l.b16 %v747
    %v775 = vunpack.c.l.b16 %v748
    %v776 = vunpack.c.l.b16 %v749
    %v777 = vunpack.c.l.b16 %v750
    %v778 = vunpack.c.l.b16 %v751
    %v779 = vpack.c.b16 %v772, %v771
    %v780 = vpack.c.b16 %v774, %v773
    %v781 = vpack.c.b16 %v776, %v775
    %v782 = vpack.c.b16 %v778, %v777
    %v788 = vsel %vm452, %v758, 0
    %v791 = vsel %vm452, %v760, 0
    %v794 = vsel %vm452, %v762, 0
    %796 = vmatpush.bf16.msra.mxu0 0
    %797 = vmatpush.bf16.msra.mxu0 0
    %798 = vmatpush.bf16.msra.mxu0 0
    %799 = vmatpush.bf16.msra.mxu0 0
    %800 = vmatpush.bf16.msra.mxu0 %v782
    %801 = vmatpush.bf16.msra.mxu0 %v781
    %802 = vmatpush.bf16.msra.mxu0 %v780
    %803 = vmatpush.bf16.msra.mxu0 %v779
    %804 = vmatmul.bf16.gmra.mxu0 %v788
    %v805 = vpop.f32.mrf.mxu0
    %v806 = vadd.f32 0.0, %v805
    %v807 = vpop.f32.mrf.mxu0
    %v808 = vadd.f32 0.0, %v807
    %809 = vmatmul.bf16.gmra.mxu0 %v791
    %v810 = vpop.f32.mrf.mxu0
    %v811 = vadd.f32 0.0, %v810
    %v812 = vpop.f32.mrf.mxu0
    %v813 = vadd.f32 0.0, %v812
    %814 = vmatmul.bf16.gmra.mxu0 %v794
    %v815 = vpop.f32.mrf.mxu0
    %v816 = vadd.f32 0.0, %v815
    %v817 = vpop.f32.mrf.mxu0
    %v818 = vadd.f32 0.0, %v817
    %819 = vdwg.mxu0
    %v828 = vunpack.c.l.b16 %v734
    %v829 = vunpack.c.l.b16 %v735
    %v830 = vunpack.c.l.b16 %v736
    %v831 = vunpack.c.l.b16 %v737
    %v832 = vunpack.c.l.b16 %v738
    %v833 = vunpack.c.l.b16 %v739
    %v834 = vunpack.c.l.b16 %v740
    %v835 = vunpack.c.l.b16 %v741
    %v836 = vpack.c.b16 %v829, %v828
    %v837 = vpack.c.b16 %v831, %v830
    %v838 = vpack.c.b16 %v833, %v832
    %v839 = vpack.c.b16 %v835, %v834
    %v845 = vsel %vm452, %v731, 0
    %v848 = vsel %vm452, %v732, 0
    %v851 = vsel %vm452, %v733, 0
    %853 = vmatpush.bf16.msra.mxu0 0
    %854 = vmatpush.bf16.msra.mxu0 0
    %855 = vmatpush.bf16.msra.mxu0 0
    %856 = vmatpush.bf16.msra.mxu0 0
    %857 = vmatpush.bf16.msra.mxu0 %v839
    %858 = vmatpush.bf16.msra.mxu0 %v838
    %859 = vmatpush.bf16.msra.mxu0 %v837
    %860 = vmatpush.bf16.msra.mxu0 %v836
    %861 = vmatmul.bf16.gmra.mxu0 %v845
    %v862 = vpop.f32.mrf.mxu0
    %v863 = vadd.f32 %v806, %v862
    %v864 = vpop.f32.mrf.mxu0
    %v865 = vadd.f32 %v808, %v864
    %866 = vmatmul.bf16.gmra.mxu0 %v848
    %v867 = vpop.f32.mrf.mxu0
    %v868 = vadd.f32 %v811, %v867
    %v869 = vpop.f32.mrf.mxu0
    %v870 = vadd.f32 %v813, %v869
    %871 = vmatmul.bf16.gmra.mxu0 %v851
    %v872 = vpop.f32.mrf.mxu0
    %v873 = vadd.f32 %v816, %v872
    %v874 = vpop.f32.mrf.mxu0
    %v875 = vadd.f32 %v818, %v874
    %876 = vdwg.mxu0
    %v877 = vpack.c.bf16 %v726, %v725
    %v878 = vpack.c.bf16 %v728, %v727
    %v879 = vpack.c.bf16 %v730, %v729
    %s880 = scalar_lea.vmem [#allocation5], 64
    %v881 = vld [vmem:[%s880] sm:$0xf]
    %v882 = vld [vmem:[%s880 + $0x4] sm:$0xf]
    %v883 = vld [vmem:[%s880 + $0x8] sm:$0xf]
    %v884 = vld [vmem:[%s880 + $0xc] sm:$0xf]
    %v885 = vld [vmem:[%s880 + $0x10] sm:$0xf]
    %v886 = vld [vmem:[%s880 + $0x14] sm:$0xf]
    %v887 = vld [vmem:[%s880 + $0x18] sm:$0xf]
    %v888 = vld [vmem:[%s880 + $0x1c] sm:$0xf]
    %v897 = vunpack.c.l.b16 %v881
    %v898 = vunpack.c.l.b16 %v882
    %v899 = vunpack.c.l.b16 %v883
    %v900 = vunpack.c.l.b16 %v884
    %v901 = vunpack.c.l.b16 %v885
    %v902 = vunpack.c.l.b16 %v886
    %v903 = vunpack.c.l.b16 %v887
    %v904 = vunpack.c.l.b16 %v888
    %v905 = vpack.c.b16 %v898, %v897
    %v906 = vpack.c.b16 %v900, %v899
    %v907 = vpack.c.b16 %v902, %v901
    %v908 = vpack.c.b16 %v904, %v903
    %v914 = vsel %vm452, %v877, 0
    %v917 = vsel %vm452, %v878, 0
    %v920 = vsel %vm452, %v879, 0
    %922 = vmatpush.bf16.msra.mxu0 0
    %923 = vmatpush.bf16.msra.mxu0 0
    %924 = vmatpush.bf16.msra.mxu0 0
    %925 = vmatpush.bf16.msra.mxu0 0
    %926 = vmatpush.bf16.msra.mxu0 %v908
    %927 = vmatpush.bf16.msra.mxu0 %v907
    %928 = vmatpush.bf16.msra.mxu0 %v906
    %929 = vmatpush.bf16.msra.mxu0 %v905
    %930 = vmatmul.bf16.gmra.mxu0 %v914
    %v931 = vpop.f32.mrf.mxu0
    %v932 = vadd.f32 0.0, %v931
    %v933 = vpop.f32.mrf.mxu0
    %v934 = vadd.f32 0.0, %v933
    %935 = vmatmul.bf16.gmra.mxu0 %v917
    %v936 = vpop.f32.mrf.mxu0
    %v937 = vadd.f32 0.0, %v936
    %v938 = vpop.f32.mrf.mxu0
    %v939 = vadd.f32 0.0, %v938
    %940 = vmatmul.bf16.gmra.mxu0 %v920
    %v941 = vpop.f32.mrf.mxu0
    %v942 = vadd.f32 0.0, %v941
    %v943 = vpop.f32.mrf.mxu0
    %v944 = vadd.f32 0.0, %v943
    %945 = vdwg.mxu0
    %v946 = vadd.f32 %v863, %v932
    %v947 = vadd.f32 %v865, %v934
    %v948 = vadd.f32 %v868, %v937
    %v949 = vadd.f32 %v870, %v939
    %v950 = vadd.f32 %v873, %v942
    %v951 = vadd.f32 %v875, %v944
    %v952 = vld [vmem:[%s10] sm:$0x1]
    %v954 = vperm.slane %v952, 0
    %v956 = vadd.f32 %v946, %v954
    %v957 = vadd.f32 %v947, %v954
    %v958 = vadd.f32 %v948, %v954
    %v959 = vadd.f32 %v949, %v954
    %v960 = vadd.f32 %v950, %v954
    %v961 = vadd.f32 %v951, %v954
    %v962 = vmax.f32 %v956, 0.0
    %v963 = vmax.f32 %v957, 0.0
    %v964 = vmax.f32 %v958, 0.0
    %v965 = vmax.f32 %v959, 0.0
    %v966 = vmax.f32 %v960, 0.0
    %v967 = vmax.f32 %v961, 0.0
    %v968 = vpack.c.bf16 %v963, %v962
    %v969 = vpack.c.bf16 %v965, %v964
    %v970 = vpack.c.bf16 %v967, %v966
    %v971 = vld [vmem:[%s11] sm:$0xf]
    %v972 = vld [vmem:[%s11 + $0x4] sm:$0xf]
    %v973 = vld [vmem:[%s11 + $0x8] sm:$0xf]
    %v974 = vld [vmem:[%s11 + $0xc] sm:$0xf]
    %v975 = vld [vmem:[%s11 + $0x10] sm:$0xf]
    %v976 = vld [vmem:[%s11 + $0x14] sm:$0xf]
    %v977 = vld [vmem:[%s11 + $0x18] sm:$0xf]
    %v978 = vld [vmem:[%s11 + $0x1c] sm:$0xf]
    %v979 = vld [vmem:[%s12] sm:$0x1]
    %v981 = vperm.slane %v979, 0
    %v991 = vunpack.c.l.b16 %v971
    %v992 = vunpack.c.l.b16 %v972
    %v993 = vunpack.c.l.b16 %v973
    %v994 = vunpack.c.l.b16 %v974
    %v995 = vunpack.c.l.b16 %v975
    %v996 = vunpack.c.l.b16 %v976
    %v997 = vunpack.c.l.b16 %v977
    %v998 = vunpack.c.l.b16 %v978
    %v999 = vpack.c.b16 %v992, %v991
    %v1000 = vpack.c.b16 %v994, %v993
    %v1001 = vpack.c.b16 %v996, %v995
    %v1002 = vpack.c.b16 %v998, %v997
    %v1008 = vsel %vm452, %v968, 0
    %v1011 = vsel %vm452, %v969, 0
    %v1014 = vsel %vm452, %v970, 0
    %1016 = vmatpush.bf16.msra.mxu0 0
    %1017 = vmatpush.bf16.msra.mxu0 0
    %1018 = vmatpush.bf16.msra.mxu0 0
    %1019 = vmatpush.bf16.msra.mxu0 0
    %1020 = vmatpush.bf16.msra.mxu0 %v1002
    %1021 = vmatpush.bf16.msra.mxu0 %v1001
    %1022 = vmatpush.bf16.msra.mxu0 %v1000
    %1023 = vmatpush.bf16.msra.mxu0 %v999
    %1024 = vmatmul.bf16.gmra.mxu0 %v1008
    %v1025 = vpop.f32.mrf.mxu0
    %v1026 = vadd.f32 %v981, %v1025
    %v1027 = vpop.f32.mrf.mxu0
    %v1028 = vadd.f32 %v981, %v1027
    %1029 = vmatmul.bf16.gmra.mxu0 %v1011
    %v1030 = vpop.f32.mrf.mxu0
    %v1031 = vadd.f32 %v981, %v1030
    %v1032 = vpop.f32.mrf.mxu0
    %1033 = vmatmul.bf16.gmra.mxu0 %v1014
    %v1034 = vpop.f32.mrf.mxu0
    %v1035 = vadd.f32 %v981, %v1034
    %v1036 = vpop.f32.mrf.mxu0
    %v1037 = vadd.f32 %v981, %v1036
    %1038 = vdwg.mxu0
    %vm1042 = vcmask 1043456
    %v1043 = vrot.slane %v1026, 4
    %v1044 = vrot.slane %v1028, 4
    %v1045 = vsel %vm1042, %v1043, %v1044
    %v1046 = vrot.slane %v1035, 4
    %v1049 = vmax.f32 %v1026, %v1045
    %v1050 = vmax.f32 %v1035, %v1046
    %v1051 = vmax.f32 %v1049, %v1028
    %v1052 = vmax.f32 %v1050, %v1037
    %v1055 = vrot.slane %v1031, 4
    %v1056 = vsel %vm1042, %v1044, %v1055
    %v1057 = vrot.slane %v1037, 4
    %v1060 = vmax.f32 %v1051, %v1056
    %v1061 = vmax.f32 %v1052, %v1057
    %1063 = vrot.lane.b32.xlu0 %v1061, 32
    %v1064 = vpop.permute.xlu0 %1063
    %v1066 = vsel %vm143, %v1060, %v1064
    %vm1067 = vcmask 516096
    %1068 = vst.msk [vmem:[#allocation7] sm:$0x1] %vm1067, %v1066
    // Predicated region
    $region62: #{tpu_custom_call.1} parent=1 // pred_check
      _
    $region63: #{tpu_custom_call.1} parent=1 // pred_check_branch
      %1070 = sbr.rel (0) target = $region65
    $region64: #{tpu_custom_call.1} parent=1 // pred_region
      %1072 = vsyncadd [#allocation4], 0
      %s1074 = sshll.u32 [#allocation7], 4
      %s1075 = int_to_ptr.vmem [resolvable:$true] %s1074
      %s1076 = sshll.u32 %s13, 4
      %s1077 = int_to_ptr.hbm [resolvable:$true] %s1076
      %1079 = dma.vmem_to_hbm [thread:$0]  %s1075, 16, %s1077, [#allocation4]
    $region65: #{tpu_custom_call.1} parent=1 // pred_fallthru
      _
    // Predicated region
    $region66: #{tpu_custom_call.1} parent=1 // pred_check
      _
    $region67: #{tpu_custom_call.1} parent=1 // pred_check_branch
      %1081 = sbr.rel (0) target = $region69
    $region68: #{tpu_custom_call.1} parent=1 // pred_region
      %1083 = dma.done [#allocation4], 16
    $region69: #{tpu_custom_call.1} parent=1 // pred_fallthru
      _
    %1084 = vsyncpa [#allocation3], 1
    %1085 = vsyncpa [#allocation6], 1
    %1086 = vsyncpa [#allocation4], 1

</llo_original>
